<compile_context>
chip_gen: v5e
topology: v5e:2x2
jax: 0.10.0
libtpu: 0.0.40
codegen_flags: <defaults>
</compile_context>

<pallas_src>
import functools

import jax
import jax.numpy as jnp
from jax import lax
from jax.experimental import pallas as pl
from jax.experimental.pallas import tpu as pltpu

NUM_CONV_LAYERS = 5
LANE = 128
SUBLANE = 8


def _round_up(x, m):
    return -(-x // m) * m


# ----------------------------- Pallas kernel ------------------------------ #
def _graph_embedding_kernel(feat_ref, src_ref, dst_ref, drow_ref,
                            wexp_ref, bexp_ref, wg_ref, bg_ref,
                            out_ref,
                            *, num_layers, num_nodes, rows_out, mask_col):
    """One grid step == one independent mini-batch (N_pad nodes)."""
    f32 = jnp.float32
    n = num_nodes

    feat = feat_ref[0]          # (N_pad, NF_pad)  zero-padded features
    src = src_ref[0]            # (1, E_pad)       int32, padded with -1
    dst = dst_ref[0]            # (E_pad, 1)       int32, padded with -1
    drow = drow_ref[0]          # (1, N_pad)       int32 dense-batch row (or -1)

    # ---- build A_norm = D^-1/2 (A + 2I) D^-1/2 entirely in VMEM ------------
    # Adjacency via one-hot matmuls on the MXU (no XLA scatter-add dispatch).
    e_pad = src.shape[1]
    one_src = (lax.broadcasted_iota(jnp.int32, (n, e_pad), 0) == src).astype(f32)
    one_dst = (lax.broadcasted_iota(jnp.int32, (e_pad, n), 1) == dst).astype(f32)
    a = jnp.dot(one_src, one_dst, preferred_element_type=f32)        # (N, N)
    eye = (lax.broadcasted_iota(jnp.int32, (n, n), 0) ==
           lax.broadcasted_iota(jnp.int32, (n, n), 1)).astype(f32)
    a = a + 2.0 * eye                                # improved=True self loops
    # Self-loops guarantee deg >= 2, so rsqrt never sees zero (matches PyG's
    # masked_fill(inf, 0) behavior). Undirected molecular edge lists give a
    # symmetric A, so row/col degree normalization equals PyG's gcn_norm.
    deg_r = jnp.sum(a, axis=1, keepdims=True)                        # (N, 1)
    deg_c = jnp.sum(a, axis=0, keepdims=True)                        # (1, N)
    a = lax.rsqrt(deg_r) * a * lax.rsqrt(deg_c)                      # normalized

    # ---- expansion + GCN stack ---------------------------------------------
    h = jnp.log(feat + 1.0)     # exact parity with torch.log(atoms + 1)
    h = jnp.dot(h, wexp_ref[...], preferred_element_type=f32) + bexp_ref[...]
    for l in range(num_layers):                      # static, unrolled
        hw = jnp.dot(h, wg_ref[l], preferred_element_type=f32)
        h = jnp.dot(a, hw, preferred_element_type=f32) + bg_ref[l]
        h = jnp.maximum(h, 0.0)                      # ReLU

    # ---- fused to_dense_batch: one-hot scatter matmul ----------------------
    scat = (lax.broadcasted_iota(jnp.int32, (rows_out, n), 0) == drow).astype(f32)
    dense = jnp.dot(scat, h, preferred_element_type=f32)       # (rows_out, D_pad)
    mask = jnp.sum(scat, axis=1, keepdims=True)                 # (rows_out, 1)
    # Fold the mask into spare (zero) lane column `mask_col` -> one lane-dense
    # output store instead of an extra width-1 masked store.
    col = (lax.broadcasted_iota(jnp.int32, (1, dense.shape[1]), 1)
           == mask_col).astype(f32)
    out_ref[0] = (dense + mask * col).astype(out_ref.dtype)


# ------------------------------- wrappers ---------------------------------- #
def graph_embedding_stacked(feat, src_row, dst_col, dense_row, params,
                            *, max_atoms, batch_size):
    """Run G independent mini-batches in one pallas_call (grid over G)."""
    g, n, nf = feat.shape
    e_pad = src_row.shape[2]
    d = params["w_exp"].shape[1]
    num_layers = params["w_gcn"].shape[0]
    rows_out = batch_size * max_atoms

    # Lane/sublane friendly padding (done once, outside the kernel).
    n_pad = _round_up(n, SUBLANE)
    nf_pad = _round_up(nf, LANE)
    d_pad = _round_up(d + 1, LANE)          # +1 spare column holds the mask
    rows_pad = _round_up(rows_out, SUBLANE)

    feat_p = jnp.zeros((g, n_pad, nf_pad), jnp.float32).at[:, :n, :nf].set(
        feat.astype(jnp.float32))
    drow_p = jnp.full((g, 1, n_pad), -1, jnp.int32).at[:, :, :n].set(
        dense_row.astype(jnp.int32))
    w_exp_p = jnp.zeros((nf_pad, d_pad), jnp.float32).at[:nf, :d].set(
        params["w_exp"])
    b_exp_p = jnp.zeros((1, d_pad), jnp.float32).at[:, :d].set(params["b_exp"])
    w_gcn_p = jnp.zeros((num_layers, d_pad, d_pad), jnp.float32).at[
        :, :d, :d].set(params["w_gcn"])
    b_gcn_p = jnp.zeros((num_layers, 1, d_pad), jnp.float32).at[
        :, :, :d].set(params["b_gcn"])

    kernel = functools.partial(_graph_embedding_kernel,
                               num_layers=num_layers,
                               num_nodes=n_pad,
                               rows_out=rows_pad,
                               mask_col=d)

    out = pl.pallas_call(
        kernel,
        out_shape=jax.ShapeDtypeStruct((g, rows_pad, d_pad), jnp.float32),
        grid_spec=pltpu.PrefetchScalarGridSpec(
            num_scalar_prefetch=0,
            grid=(g,),
            in_specs=[
                pl.BlockSpec((1, n_pad, nf_pad), lambda i: (i, 0, 0)),   # features
                pl.BlockSpec((1, 1, e_pad), lambda i: (i, 0, 0)),        # edge src
                pl.BlockSpec((1, e_pad, 1), lambda i: (i, 0, 0)),        # edge dst
                pl.BlockSpec((1, 1, n_pad), lambda i: (i, 0, 0)),        # dense rows
                pl.BlockSpec((nf_pad, d_pad), lambda i: (0, 0)),         # W_exp
                pl.BlockSpec((1, d_pad), lambda i: (0, 0)),              # b_exp
                pl.BlockSpec((num_layers, d_pad, d_pad), lambda i: (0, 0, 0)),
                pl.BlockSpec((num_layers, 1, d_pad), lambda i: (0, 0, 0)),
            ],
            out_specs=pl.BlockSpec((1, rows_pad, d_pad), lambda i: (i, 0, 0)),
        ),
        compiler_params=pltpu.CompilerParams(
            dimension_semantics=("parallel",)),   # v7x: shard G across 2 TCs
    )(feat_p, src_row, dst_col, drow_p, w_exp_p, b_exp_p, w_gcn_p, b_gcn_p)

    flat = out[:, :rows_out, :]
    dense = flat[..., :d].reshape(g, batch_size, max_atoms, d)
    mask = (flat[..., d] > 0.5).reshape(g, batch_size, max_atoms)
    return dense, mask


def _pack_edges(edge_index, e_pad):
    """Pad edge list to e_pad (sentinel -1 -> zero one-hot rows)."""
    e = edge_index.shape[1]
    pad = e_pad - e
    src = jnp.concatenate([edge_index[0].astype(jnp.int32),
                           jnp.full((pad,), -1, jnp.int32)])
    dst = jnp.concatenate([edge_index[1].astype(jnp.int32),
                           jnp.full((pad,), -1, jnp.int32)])
    return src.reshape(1, e_pad), dst.reshape(e_pad, 1)


def _pack_dense_rows(batch, num_nodes, max_atoms, batch_size):
    """Per-node target row in the flat (batch_size*max_atoms, D) dense output.

    Counts are built with a one-hot reduction (no scatter); batch is assumed
    sorted (same as torch_geometric.to_dense_batch). Nodes beyond max_atoms
    get -1 and are dropped (PyG behavior)."""
    gid = jnp.arange(batch_size, dtype=jnp.int32)
    counts = jnp.sum((batch[None, :] == gid[:, None]).astype(jnp.int32), axis=1)
    ptr = jnp.concatenate([jnp.zeros((1,), jnp.int32),
                           jnp.cumsum(counts)[:-1].astype(jnp.int32)])
    pos = jnp.arange(num_nodes, dtype=jnp.int32) - ptr[batch]
    drow = jnp.where(pos < max_atoms, batch * max_atoms + pos, -1)
    return drow.astype(jnp.int32).reshape(1, num_nodes)


def graph_embedding_forward(atoms_feat, edge_index, batch, params,
                            max_atoms, batch_size):
    """Module-equivalent forward for a single mini-batch (G = 1)."""
    n = atoms_feat.shape[0]
    e = edge_index.shape[1]
    e_pad = max(LANE, _round_up(e, LANE))
    src_row, dst_col = _pack_edges(edge_index, e_pad)
    drow = _pack_dense_rows(batch, n, max_atoms, batch_size)
    dense, mask = graph_embedding_stacked(
        atoms_feat[None], src_row[None], dst_col[None], drow[None], params,
        max_atoms=max_atoms, batch_size=batch_size)
    return dense[0], mask[0]


# --------------------------- pure-JAX reference ---------------------------- #
def _reference_forward(atoms_feat, edge_index, batch, params,
                       max_atoms, batch_size):
    n = atoms_feat.shape[0]
    src, dst = edge_index
    a = jnp.zeros((n, n), jnp.float32).at[src, dst].add(1.0)
    a = a + 2.0 * jnp.eye(n, dtype=jnp.float32)
    dr = 1.0 / jnp.sqrt(a.sum(axis=1, keepdims=True))
    dc = 1.0 / jnp.sqrt(a.sum(axis=0, keepdims=True))
    a = dr * a * dc
    h = jnp.log(atoms_feat + 1.0) @ params["w_exp"] + params["b_exp"]
    for l in range(params["w_gcn"].shape[0]):
        h = jnp.maximum(a @ (h @ params["w_gcn"][l]) + params["b_gcn"][l], 0.0)
    counts = jnp.zeros((batch_size,), jnp.int32).at[batch].add(1)
    ptr = jnp.concatenate([jnp.zeros((1,), jnp.int32),
                           jnp.cumsum(counts)[:-1].astype(jnp.int32)])
    pos = jnp.arange(n, dtype=jnp.int32) - ptr[batch]
    dense = jnp.zeros((batch_size, max_atoms, h.shape[1]), h.dtype).at[batch, pos].set(h)
    mask = jnp.zeros((batch_size, max_atoms), bool).at[batch, pos].set(True)
    return dense, mask


# --------------------------------- main ------------------------------------ #
if __name__ == "__main__":
    max_atoms = 16
    vector_dim = 32
    batch_size = 2
    n_feat = 11

    # two graphs: 10 and 14 nodes
    graph_sizes = [10, 14]
    n_nodes = sum(graph_sizes)
    batch_vec = jnp.array(sum(([g] * s for g, s in enumerate(graph_sizes)), []),
                          dtype=jnp.int32)

    # chain connectivity inside each graph (undirected -> both directions)
    src, dst = [], []
    start = 0
    for s in graph_sizes:
        for i in range(start, start + s - 1):
            src += [i, i + 1]
            dst += [i + 1, i]
        start += s
    edge_index = jnp.array([src, dst], dtype=jnp.int32)

    key = jax.random.PRNGKey(0)
    k_at, k_we, k_be, k_wg, k_bg, k_stack = jax.random.split(key, 6)

    atoms_feat = jax.random.uniform(k_at, (n_nodes, n_feat), dtype=jnp.float32,
                                    minval=0.0, maxval=4.0)
    params = {
        "w_exp": jax.random.normal(k_we, (n_feat, vector_dim),
                                   dtype=jnp.float32) * 0.2,
        "b_exp": jax.random.normal(k_be, (1, vector_dim),
                                   dtype=jnp.float32) * 0.05,
        "w_gcn": jax.random.normal(k_wg, (NUM_CONV_LAYERS, vector_dim, vector_dim),
                                   dtype=jnp.float32) * 0.2,
        "b_gcn": jax.random.normal(k_bg, (NUM_CONV_LAYERS, 1, vector_dim),
                                   dtype=jnp.float32) * 0.05,
    }

    # --- module-equivalent single mini-batch forward --------------------------
    dense, mask = graph_embedding_forward(atoms_feat, edge_index, batch_vec,
                                          params, max_atoms, batch_size)
    dense = jax.block_until_ready(dense)
    mask = jax.block_until_ready(mask)

    ref_dense, ref_mask = _reference_forward(atoms_feat, edge_index, batch_vec,
                                             params, max_atoms, batch_size)
    assert dense.shape == (batch_size, max_atoms, vector_dim)
    assert mask.shape == (batch_size, max_atoms)
    assert jnp.allclose(dense, ref_dense, atol=1e-4, rtol=1e-4)
    assert bool(jnp.all(mask == ref_mask))

    # --- stacked multi-mini-batch path (grid over G, "parallel") -------------
    g_stack = 3
    feats_stack = jax.random.uniform(k_stack, (g_stack, n_nodes, n_feat),
                                     dtype=jnp.float32, minval=0.0, maxval=4.0)
    e_pad = max(LANE, _round_up(edge_index.shape[1], LANE))
    src_row, dst_col = _pack_edges(edge_index, e_pad)
    drow = _pack_dense_rows(batch_vec, n_nodes, max_atoms, batch_size)
    dense_s, mask_s = graph_embedding_stacked(
        feats_stack,
        jnp.stack([src_row] * g_stack),
        jnp.stack([dst_col] * g_stack),
        jnp.stack([drow] * g_stack),
        params, max_atoms=max_atoms, batch_size=batch_size)
    dense_s = jax.block_until_ready(dense_s)
    mask_s = jax.block_until_ready(mask_s)
    for gi in range(g_stack):
        rd, rm = _reference_forward(feats_stack[gi], edge_index, batch_vec,
                                    params, max_atoms, batch_size)
        assert jnp.allclose(dense_s[gi], rd, atol=1e-4, rtol=1e-4)
        assert bool(jnp.all(mask_s[gi] == rm))

    print("KERNEL_OK")
</pallas_src>

<mosaic_0001>
module attributes {stable_mosaic.version = 11 : i64} {
  func.func @_graph_embedding_kernel(%arg0: i32, %arg1: memref<1x24x128xf32, #tpu.memory_space<vmem>>, %arg2: memref<1x1x128xi32, #tpu.memory_space<vmem>>, %arg3: memref<1x128x1xi32, #tpu.memory_space<vmem>>, %arg4: memref<1x1x24xi32, #tpu.memory_space<vmem>>, %arg5: memref<128x128xf32, #tpu.memory_space<vmem>>, %arg6: memref<1x128xf32, #tpu.memory_space<vmem>>, %arg7: memref<5x128x128xf32, #tpu.memory_space<vmem>>, %arg8: memref<5x1x128xf32, #tpu.memory_space<vmem>>, %arg9: memref<1x32x128xf32, #tpu.memory_space<vmem>>) attributes {dimension_semantics = [#tpu.dimension_semantics<parallel>], iteration_bounds = array<i64: 1>, scalar_prefetch = 0 : i64, scratch_operands = 0 : i64, tpu.core_type = #tpu.core_type<tc>, window_params = [{transform_indices = @transform_0, window_bounds = array<i64: 1, 24, 128>}, {transform_indices = @transform_1, window_bounds = array<i64: 1, 1, 128>}, {transform_indices = @transform_2, window_bounds = array<i64: 1, 128, 1>}, {transform_indices = @transform_3, window_bounds = array<i64: 1, 1, 24>}, {pipeline_mode = #tpu.pipeline_mode<synchronous>, transform_indices = @transform_4, window_bounds = array<i64: 128, 128>}, {pipeline_mode = #tpu.pipeline_mode<synchronous>, transform_indices = @transform_5, window_bounds = array<i64: 1, 128>}, {pipeline_mode = #tpu.pipeline_mode<synchronous>, transform_indices = @transform_6, window_bounds = array<i64: 5, 128, 128>}, {pipeline_mode = #tpu.pipeline_mode<synchronous>, transform_indices = @transform_7, window_bounds = array<i64: 5, 1, 128>}, {transform_indices = @transform_8, window_bounds = array<i64: 1, 32, 128>}]} {
    %c0 = arith.constant 0 : index
    %c0_0 = arith.constant 0 : index
    %c0_1 = arith.constant 0 : index
    %0 = vector.load %arg1[%c0, %c0_0, %c0_1] : memref<1x24x128xf32, #tpu.memory_space<vmem>>, vector<1x24x128xf32>
    %1 = vector.shape_cast %0 : vector<1x24x128xf32> to vector<24x128xf32>
    %c0_2 = arith.constant 0 : index
    %c0_3 = arith.constant 0 : index
    %c0_4 = arith.constant 0 : index
    %2 = vector.load %arg2[%c0_2, %c0_3, %c0_4] : memref<1x1x128xi32, #tpu.memory_space<vmem>>, vector<1x1x128xi32>
    %3 = vector.shape_cast %2 : vector<1x1x128xi32> to vector<1x128xi32>
    %c0_5 = arith.constant 0 : index
    %c0_6 = arith.constant 0 : index
    %c0_7 = arith.constant 0 : index
    %4 = vector.load %arg3[%c0_5, %c0_6, %c0_7] : memref<1x128x1xi32, #tpu.memory_space<vmem>>, vector<1x128x1xi32>
    %5 = vector.shape_cast %4 : vector<1x128x1xi32> to vector<128x1xi32>
    %c0_8 = arith.constant 0 : index
    %c0_9 = arith.constant 0 : index
    %c0_10 = arith.constant 0 : index
    %6 = vector.load %arg4[%c0_8, %c0_9, %c0_10] : memref<1x1x24xi32, #tpu.memory_space<vmem>>, vector<1x1x24xi32>
    %7 = vector.shape_cast %6 : vector<1x1x24xi32> to vector<1x24xi32>
    %8 = tpu.iota {dimensions = array<i32: 0>} : vector<24x128xi32>
    %9 = vector.broadcast %3 : vector<1x128xi32> to vector<24x128xi32>
    %10 = arith.cmpi eq, %8, %9 : vector<24x128xi32>
    %11 = arith.extui %10 : vector<24x128xi1> to vector<24x128xi32>
    %12 = arith.sitofp %11 : vector<24x128xi32> to vector<24x128xf32>
    %13 = tpu.iota {dimensions = array<i32: 1>} : vector<128x24xi32>
    %14 = vector.broadcast %5 : vector<128x1xi32> to vector<128x24xi32>
    %15 = arith.cmpi eq, %13, %14 : vector<128x24xi32>
    %16 = arith.extui %15 : vector<128x24xi1> to vector<128x24xi32>
    %17 = arith.sitofp %16 : vector<128x24xi32> to vector<128x24xf32>
    %cst = arith.constant dense<0.000000e+00> : vector<24x24xf32>
    %18 = tpu.matmul %12, %17, %cst {dimension_numbers = #tpu.dot_dimension_numbers<[1], [0], [0], [1], [0, 0, 1, 1], [], []>} : vector<24x128xf32>, vector<128x24xf32>, vector<24x24xf32> -> vector<24x24xf32>
    %19 = tpu.iota {dimensions = array<i32: 0>} : vector<24x24xi32>
    %20 = tpu.iota {dimensions = array<i32: 1>} : vector<24x24xi32>
    %21 = arith.cmpi eq, %19, %20 : vector<24x24xi32>
    %22 = arith.extui %21 : vector<24x24xi1> to vector<24x24xi32>
    %23 = arith.sitofp %22 : vector<24x24xi32> to vector<24x24xf32>
    %cst_11 = arith.constant 2.000000e+00 : f32
    %24 = vector.broadcast %cst_11 : f32 to vector<24x24xf32>
    %25 = arith.mulf %24, %23 : vector<24x24xf32>
    %26 = arith.addf %18, %25 : vector<24x24xf32>
    %cst_12 = arith.constant dense<0.000000e+00> : vector<24xf32>
    %27 = vector.multi_reduction <add>, %26, %cst_12 [1] : vector<24x24xf32> to vector<24xf32>
    %28 = vector.shape_cast %27 : vector<24xf32> to vector<24x1xf32>
    %cst_13 = arith.constant dense<0.000000e+00> : vector<24xf32>
    %29 = vector.multi_reduction <add>, %26, %cst_13 [0] : vector<24x24xf32> to vector<24xf32>
    %30 = vector.shape_cast %29 : vector<24xf32> to vector<1x24xf32>
    %31 = math.rsqrt %28 : vector<24x1xf32>
    %32 = vector.broadcast %31 : vector<24x1xf32> to vector<24x24xf32>
    %33 = arith.mulf %32, %26 : vector<24x24xf32>
    %34 = math.rsqrt %30 : vector<1x24xf32>
    %35 = vector.broadcast %34 : vector<1x24xf32> to vector<24x24xf32>
    %36 = arith.mulf %33, %35 : vector<24x24xf32>
    %cst_14 = arith.constant 1.000000e+00 : f32
    %37 = vector.broadcast %cst_14 : f32 to vector<24x128xf32>
    %38 = arith.addf %1, %37 : vector<24x128xf32>
    %39 = math.log %38 : vector<24x128xf32>
    %c0_15 = arith.constant 0 : index
    %c0_16 = arith.constant 0 : index
    %40 = vector.load %arg5[%c0_15, %c0_16] : memref<128x128xf32, #tpu.memory_space<vmem>>, vector<128x128xf32>
    %cst_17 = arith.constant dense<0.000000e+00> : vector<24x128xf32>
    %41 = tpu.matmul %39, %40, %cst_17 {dimension_numbers = #tpu.dot_dimension_numbers<[1], [0], [0], [1], [0, 0, 1, 1], [], []>} : vector<24x128xf32>, vector<128x128xf32>, vector<24x128xf32> -> vector<24x128xf32>
    %c0_18 = arith.constant 0 : index
    %c0_19 = arith.constant 0 : index
    %42 = vector.load %arg6[%c0_18, %c0_19] : memref<1x128xf32, #tpu.memory_space<vmem>>, vector<1x128xf32>
    %43 = vector.broadcast %42 : vector<1x128xf32> to vector<24x128xf32>
    %44 = arith.addf %41, %43 : vector<24x128xf32>
    %c0_20 = arith.constant 0 : index
    %c0_21 = arith.constant 0 : index
    %c0_22 = arith.constant 0 : index
    %45 = vector.load %arg7[%c0_20, %c0_21, %c0_22] : memref<5x128x128xf32, #tpu.memory_space<vmem>>, vector<1x128x128xf32>
    %46 = vector.shape_cast %45 : vector<1x128x128xf32> to vector<128x128xf32>
    %cst_23 = arith.constant dense<0.000000e+00> : vector<24x128xf32>
    %47 = tpu.matmul %44, %46, %cst_23 {dimension_numbers = #tpu.dot_dimension_numbers<[1], [0], [0], [1], [0, 0, 1, 1], [], []>} : vector<24x128xf32>, vector<128x128xf32>, vector<24x128xf32> -> vector<24x128xf32>
    %cst_24 = arith.constant dense<0.000000e+00> : vector<24x128xf32>
    %48 = tpu.matmul %36, %47, %cst_24 {dimension_numbers = #tpu.dot_dimension_numbers<[1], [0], [0], [1], [0, 0, 1, 1], [], []>} : vector<24x24xf32>, vector<24x128xf32>, vector<24x128xf32> -> vector<24x128xf32>
    %c0_25 = arith.constant 0 : index
    %c0_26 = arith.constant 0 : index
    %c0_27 = arith.constant 0 : index
    %49 = vector.load %arg8[%c0_25, %c0_26, %c0_27] : memref<5x1x128xf32, #tpu.memory_space<vmem>>, vector<1x1x128xf32>
    %50 = vector.shape_cast %49 : vector<1x1x128xf32> to vector<1x128xf32>
    %51 = vector.broadcast %50 : vector<1x128xf32> to vector<24x128xf32>
    %52 = arith.addf %48, %51 : vector<24x128xf32>
    %cst_28 = arith.constant 0.000000e+00 : f32
    %53 = vector.broadcast %cst_28 : f32 to vector<24x128xf32>
    %54 = arith.maximumf %52, %53 : vector<24x128xf32>
    %c1 = arith.constant 1 : index
    %c0_29 = arith.constant 0 : index
    %c0_30 = arith.constant 0 : index
    %55 = vector.load %arg7[%c1, %c0_29, %c0_30] : memref<5x128x128xf32, #tpu.memory_space<vmem>>, vector<1x128x128xf32>
    %56 = vector.shape_cast %55 : vector<1x128x128xf32> to vector<128x128xf32>
    %cst_31 = arith.constant dense<0.000000e+00> : vector<24x128xf32>
    %57 = tpu.matmul %54, %56, %cst_31 {dimension_numbers = #tpu.dot_dimension_numbers<[1], [0], [0], [1], [0, 0, 1, 1], [], []>} : vector<24x128xf32>, vector<128x128xf32>, vector<24x128xf32> -> vector<24x128xf32>
    %cst_32 = arith.constant dense<0.000000e+00> : vector<24x128xf32>
    %58 = tpu.matmul %36, %57, %cst_32 {dimension_numbers = #tpu.dot_dimension_numbers<[1], [0], [0], [1], [0, 0, 1, 1], [], []>} : vector<24x24xf32>, vector<24x128xf32>, vector<24x128xf32> -> vector<24x128xf32>
    %c1_33 = arith.constant 1 : index
    %c0_34 = arith.constant 0 : index
    %c0_35 = arith.constant 0 : index
    %59 = vector.load %arg8[%c1_33, %c0_34, %c0_35] : memref<5x1x128xf32, #tpu.memory_space<vmem>>, vector<1x1x128xf32>
    %60 = vector.shape_cast %59 : vector<1x1x128xf32> to vector<1x128xf32>
    %61 = vector.broadcast %60 : vector<1x128xf32> to vector<24x128xf32>
    %62 = arith.addf %58, %61 : vector<24x128xf32>
    %cst_36 = arith.constant 0.000000e+00 : f32
    %63 = vector.broadcast %cst_36 : f32 to vector<24x128xf32>
    %64 = arith.maximumf %62, %63 : vector<24x128xf32>
    %c2 = arith.constant 2 : index
    %c0_37 = arith.constant 0 : index
    %c0_38 = arith.constant 0 : index
    %65 = vector.load %arg7[%c2, %c0_37, %c0_38] : memref<5x128x128xf32, #tpu.memory_space<vmem>>, vector<1x128x128xf32>
    %66 = vector.shape_cast %65 : vector<1x128x128xf32> to vector<128x128xf32>
    %cst_39 = arith.constant dense<0.000000e+00> : vector<24x128xf32>
    %67 = tpu.matmul %64, %66, %cst_39 {dimension_numbers = #tpu.dot_dimension_numbers<[1], [0], [0], [1], [0, 0, 1, 1], [], []>} : vector<24x128xf32>, vector<128x128xf32>, vector<24x128xf32> -> vector<24x128xf32>
    %cst_40 = arith.constant dense<0.000000e+00> : vector<24x128xf32>
    %68 = tpu.matmul %36, %67, %cst_40 {dimension_numbers = #tpu.dot_dimension_numbers<[1], [0], [0], [1], [0, 0, 1, 1], [], []>} : vector<24x24xf32>, vector<24x128xf32>, vector<24x128xf32> -> vector<24x128xf32>
    %c2_41 = arith.constant 2 : index
    %c0_42 = arith.constant 0 : index
    %c0_43 = arith.constant 0 : index
    %69 = vector.load %arg8[%c2_41, %c0_42, %c0_43] : memref<5x1x128xf32, #tpu.memory_space<vmem>>, vector<1x1x128xf32>
    %70 = vector.shape_cast %69 : vector<1x1x128xf32> to vector<1x128xf32>
    %71 = vector.broadcast %70 : vector<1x128xf32> to vector<24x128xf32>
    %72 = arith.addf %68, %71 : vector<24x128xf32>
    %cst_44 = arith.constant 0.000000e+00 : f32
    %73 = vector.broadcast %cst_44 : f32 to vector<24x128xf32>
    %74 = arith.maximumf %72, %73 : vector<24x128xf32>
    %c3 = arith.constant 3 : index
    %c0_45 = arith.constant 0 : index
    %c0_46 = arith.constant 0 : index
    %75 = vector.load %arg7[%c3, %c0_45, %c0_46] : memref<5x128x128xf32, #tpu.memory_space<vmem>>, vector<1x128x128xf32>
    %76 = vector.shape_cast %75 : vector<1x128x128xf32> to vector<128x128xf32>
    %cst_47 = arith.constant dense<0.000000e+00> : vector<24x128xf32>
    %77 = tpu.matmul %74, %76, %cst_47 {dimension_numbers = #tpu.dot_dimension_numbers<[1], [0], [0], [1], [0, 0, 1, 1], [], []>} : vector<24x128xf32>, vector<128x128xf32>, vector<24x128xf32> -> vector<24x128xf32>
    %cst_48 = arith.constant dense<0.000000e+00> : vector<24x128xf32>
    %78 = tpu.matmul %36, %77, %cst_48 {dimension_numbers = #tpu.dot_dimension_numbers<[1], [0], [0], [1], [0, 0, 1, 1], [], []>} : vector<24x24xf32>, vector<24x128xf32>, vector<24x128xf32> -> vector<24x128xf32>
    %c3_49 = arith.constant 3 : index
    %c0_50 = arith.constant 0 : index
    %c0_51 = arith.constant 0 : index
    %79 = vector.load %arg8[%c3_49, %c0_50, %c0_51] : memref<5x1x128xf32, #tpu.memory_space<vmem>>, vector<1x1x128xf32>
    %80 = vector.shape_cast %79 : vector<1x1x128xf32> to vector<1x128xf32>
    %81 = vector.broadcast %80 : vector<1x128xf32> to vector<24x128xf32>
    %82 = arith.addf %78, %81 : vector<24x128xf32>
    %cst_52 = arith.constant 0.000000e+00 : f32
    %83 = vector.broadcast %cst_52 : f32 to vector<24x128xf32>
    %84 = arith.maximumf %82, %83 : vector<24x128xf32>
    %c4 = arith.constant 4 : index
    %c0_53 = arith.constant 0 : index
    %c0_54 = arith.constant 0 : index
    %85 = vector.load %arg7[%c4, %c0_53, %c0_54] : memref<5x128x128xf32, #tpu.memory_space<vmem>>, vector<1x128x128xf32>
    %86 = vector.shape_cast %85 : vector<1x128x128xf32> to vector<128x128xf32>
    %cst_55 = arith.constant dense<0.000000e+00> : vector<24x128xf32>
    %87 = tpu.matmul %84, %86, %cst_55 {dimension_numbers = #tpu.dot_dimension_numbers<[1], [0], [0], [1], [0, 0, 1, 1], [], []>} : vector<24x128xf32>, vector<128x128xf32>, vector<24x128xf32> -> vector<24x128xf32>
    %cst_56 = arith.constant dense<0.000000e+00> : vector<24x128xf32>
    %88 = tpu.matmul %36, %87, %cst_56 {dimension_numbers = #tpu.dot_dimension_numbers<[1], [0], [0], [1], [0, 0, 1, 1], [], []>} : vector<24x24xf32>, vector<24x128xf32>, vector<24x128xf32> -> vector<24x128xf32>
    %c4_57 = arith.constant 4 : index
    %c0_58 = arith.constant 0 : index
    %c0_59 = arith.constant 0 : index
    %89 = vector.load %arg8[%c4_57, %c0_58, %c0_59] : memref<5x1x128xf32, #tpu.memory_space<vmem>>, vector<1x1x128xf32>
    %90 = vector.shape_cast %89 : vector<1x1x128xf32> to vector<1x128xf32>
    %91 = vector.broadcast %90 : vector<1x128xf32> to vector<24x128xf32>
    %92 = arith.addf %88, %91 : vector<24x128xf32>
    %cst_60 = arith.constant 0.000000e+00 : f32
    %93 = vector.broadcast %cst_60 : f32 to vector<24x128xf32>
    %94 = arith.maximumf %92, %93 : vector<24x128xf32>
    %95 = tpu.iota {dimensions = array<i32: 0>} : vector<32x24xi32>
    %96 = vector.broadcast %7 : vector<1x24xi32> to vector<32x24xi32>
    %97 = arith.cmpi eq, %95, %96 : vector<32x24xi32>
    %98 = arith.extui %97 : vector<32x24xi1> to vector<32x24xi32>
    %99 = arith.sitofp %98 : vector<32x24xi32> to vector<32x24xf32>
    %cst_61 = arith.constant dense<0.000000e+00> : vector<32x128xf32>
    %100 = tpu.matmul %99, %94, %cst_61 {dimension_numbers = #tpu.dot_dimension_numbers<[1], [0], [0], [1], [0, 0, 1, 1], [], []>} : vector<32x24xf32>, vector<24x128xf32>, vector<32x128xf32> -> vector<32x128xf32>
    %cst_62 = arith.constant dense<0.000000e+00> : vector<32xf32>
    %101 = vector.multi_reduction <add>, %99, %cst_62 [1] : vector<32x24xf32> to vector<32xf32>
    %102 = vector.shape_cast %101 : vector<32xf32> to vector<32x1xf32>
    %103 = tpu.iota {dimensions = array<i32: 1>} : vector<1x128xi32>
    %c32_i32 = arith.constant 32 : i32
    %104 = vector.broadcast %c32_i32 : i32 to vector<1x128xi32>
    %105 = arith.cmpi eq, %103, %104 : vector<1x128xi32>
    %106 = arith.extui %105 : vector<1x128xi1> to vector<1x128xi32>
    %107 = arith.sitofp %106 : vector<1x128xi32> to vector<1x128xf32>
    %108 = vector.broadcast %102 : vector<32x1xf32> to vector<32x128xf32>
    %109 = vector.broadcast %107 : vector<1x128xf32> to vector<32x128xf32>
    %110 = arith.mulf %108, %109 : vector<32x128xf32>
    %111 = arith.addf %100, %110 : vector<32x128xf32>
    %c0_63 = arith.constant 0 : index
    %c0_64 = arith.constant 0 : index
    %c0_65 = arith.constant 0 : index
    %112 = vector.load %arg9[%c0_63, %c0_64, %c0_65] : memref<1x32x128xf32, #tpu.memory_space<vmem>>, vector<1x32x128xf32>
    %113 = vector.shape_cast %112 : vector<1x32x128xf32> to vector<32x128xf32>
    %114 = vector.shape_cast %111 : vector<32x128xf32> to vector<1x32x128xf32>
    tpu.vector_store %arg9[%c0_63, %c0_64, %c0_65], %114 {strides = array<i32>} : memref<1x32x128xf32, #tpu.memory_space<vmem>>, vector<1x32x128xf32>,
    return
  }
  func.func @transform_0(%arg0: i32) -> (i32, i32, i32) {
    %c0_i32 = arith.constant 0 : i32
    %c0_i32_0 = arith.constant 0 : i32
    %c0_i32_1 = arith.constant 0 : i32
    return %arg0, %c0_i32, %c0_i32_0 : i32, i32, i32
  }
  func.func @transform_1(%arg0: i32) -> (i32, i32, i32) {
    %c0_i32 = arith.constant 0 : i32
    %c0_i32_0 = arith.constant 0 : i32
    %c0_i32_1 = arith.constant 0 : i32
    return %arg0, %c0_i32, %c0_i32_0 : i32, i32, i32
  }
  func.func @transform_2(%arg0: i32) -> (i32, i32, i32) {
    %c0_i32 = arith.constant 0 : i32
    %c0_i32_0 = arith.constant 0 : i32
    %c0_i32_1 = arith.constant 0 : i32
    return %arg0, %c0_i32, %c0_i32_0 : i32, i32, i32
  }
  func.func @transform_3(%arg0: i32) -> (i32, i32, i32) {
    %c0_i32 = arith.constant 0 : i32
    %c0_i32_0 = arith.constant 0 : i32
    %c0_i32_1 = arith.constant 0 : i32
    return %arg0, %c0_i32, %c0_i32_0 : i32, i32, i32
  }
  func.func @transform_4(%arg0: i32) -> (i32, i32) {
    %c0_i32 = arith.constant 0 : i32
    %c0_i32_0 = arith.constant 0 : i32
    %c0_i32_1 = arith.constant 0 : i32
    return %c0_i32, %c0_i32_0 : i32, i32
  }
  func.func @transform_5(%arg0: i32) -> (i32, i32) {
    %c0_i32 = arith.constant 0 : i32
    %c0_i32_0 = arith.constant 0 : i32
    %c0_i32_1 = arith.constant 0 : i32
    return %c0_i32, %c0_i32_0 : i32, i32
  }
  func.func @transform_6(%arg0: i32) -> (i32, i32, i32) {
    %c0_i32 = arith.constant 0 : i32
    %c0_i32_0 = arith.constant 0 : i32
    %c0_i32_1 = arith.constant 0 : i32
    %c0_i32_2 = arith.constant 0 : i32
    return %c0_i32, %c0_i32_0, %c0_i32_1 : i32, i32, i32
  }
  func.func @transform_7(%arg0: i32) -> (i32, i32, i32) {
    %c0_i32 = arith.constant 0 : i32
    %c0_i32_0 = arith.constant 0 : i32
    %c0_i32_1 = arith.constant 0 : i32
    %c0_i32_2 = arith.constant 0 : i32
    return %c0_i32, %c0_i32_0, %c0_i32_1 : i32, i32, i32
  }
  func.func @transform_8(%arg0: i32) -> (i32, i32, i32) {
    %c0_i32 = arith.constant 0 : i32
    %c0_i32_0 = arith.constant 0 : i32
    %c0_i32_1 = arith.constant 0 : i32
    return %arg0, %c0_i32, %c0_i32_0 : i32, i32, i32
  }
}

</mosaic_0001>

<llo_original>
// kernel: tpu_custom_call.1
$region0: #{tpu_custom_call.1}
  #allocation0 [shape = 'u32[]', space=smem, size = 0x4, offset = 0x4, fixed_abs, tag = 'smem constant byte address 0x4 - core index']
  #allocation1 [shape = 'u32[72,128]{1,0:T(1,128)}', space=vmem, size = 0x9000, scoped, tag = 'internal scratch']
  %s0 = inlined_call_operand.hbm [shape: f32[1,24,128], index: 0, kind: input, shape index: {}]
  %s1 = inlined_call_operand.vmem [shape: s32[1,1,128], index: 1, kind: input, shape index: {}]
  %s2 = inlined_call_operand.vmem [shape: s32[1,128,1], index: 2, kind: input, shape index: {}]
  %s3 = inlined_call_operand.hbm [shape: s32[1,1,24], index: 3, kind: input, shape index: {}]
  %s4 = inlined_call_operand.vmem [shape: f32[128,128], index: 4, kind: input, shape index: {}]
  %s5 = inlined_call_operand.vmem [shape: f32[1,128], index: 5, kind: input, shape index: {}]
  %s6 = inlined_call_operand.hbm [shape: f32[5,128,128], index: 6, kind: input, shape index: {}]
  %s7 = inlined_call_operand.hbm [shape: f32[5,1,128], index: 7, kind: input, shape index: {}]
  %s8 = inlined_call_operand.hbm [shape: f32[1,32,128], index: 8, kind: output, shape index: {}]
  %s9 = sld [smem:[#allocation0]]
  $region58: #{tpu_custom_call.1} parent=0
    _
  %s11 = ssub.s32 1, %s9
  %s12 = scalar_select 0, %s11, %s9
  $region1: #{tpu_custom_call.1} parent=0
    #allocation2 [shape = 'u8[12288]{0}', space=vmem, size = 0x3000, scoped, tag = 'input window, operand 0, single buffered']
    #allocation3 [shape = 's32[1]{0}', space=sflag, size = 0x4, scoped, tag = 'scoped memory for tpu_custom_call.1']
    #allocation4 [shape = 's32[1]{0}', space=sflag, size = 0x4, scoped, tag = 'scoped memory for tpu_custom_call.1']
    #allocation5 [shape = 'u8[512]{0}', space=vmem, size = 0x400, scoped, tag = 'input window, operand 3, single buffered']
    #allocation6 [shape = 's32[1]{0}', space=sflag, size = 0x4, scoped, tag = 'scoped memory for tpu_custom_call.1']
    #allocation7 [shape = 'u8[327680]{0}', space=vmem, size = 0x50000, scoped, tag = 'input window, operand 6, single buffered']
    #allocation8 [shape = 'u8[2560]{0}', space=vmem, size = 0xc00, scoped, tag = 'input window, operand 7, single buffered']
    #allocation9 [shape = 's32[1]{0}', space=sflag, size = 0x4, scoped, tag = 'scoped memory for tpu_custom_call.1']
    #allocation10 [shape = 'u8[16384]{0}', space=vmem, size = 0x4000, scoped, tag = 'output window, operand 0, single buffered']
    %13 = vsyncpa [#allocation3], 0
    %14 = vsyncpa [#allocation6], 0
    %15 = vsyncpa [#allocation9], 0
    %16 = vsyncpa [#allocation4], 0
    // Predicated region
    $region2: #{tpu_custom_call.1} parent=1 // pred_check
      _
    $region3: #{tpu_custom_call.1} parent=1 // pred_check_branch
      %18 = sbr.rel (0) target = $region5
    $region4: #{tpu_custom_call.1} parent=1 // pred_region
      %20 = vsyncadd [#allocation3], 0
      %s21 = sshll.u32 %s0, 4
      %s22 = int_to_ptr.hbm [resolvable:$true] %s21
      %s23 = sshll.u32 [#allocation2], 4
      %s24 = int_to_ptr.vmem [resolvable:$true] %s23
      %29 = dma.hbm_to_vmem [thread:$0]  %s22, 384, %s24, [#allocation3], 128, 128, 8
    $region5: #{tpu_custom_call.1} parent=1 // pred_fallthru
      _
    // Predicated region
    $region6: #{tpu_custom_call.1} parent=1 // pred_check
      _
    $region7: #{tpu_custom_call.1} parent=1 // pred_check_branch
      %31 = sbr.rel (0) target = $region9
    $region8: #{tpu_custom_call.1} parent=1 // pred_region
      _
    $region9: #{tpu_custom_call.1} parent=1 // pred_fallthru
      _
    // Predicated region
    $region10: #{tpu_custom_call.1} parent=1 // pred_check
      _
    $region11: #{tpu_custom_call.1} parent=1 // pred_check_branch
      %33 = sbr.rel (0) target = $region13
    $region12: #{tpu_custom_call.1} parent=1 // pred_region
      _
    $region13: #{tpu_custom_call.1} parent=1 // pred_fallthru
      _
    // Predicated region
    $region14: #{tpu_custom_call.1} parent=1 // pred_check
      _
    $region15: #{tpu_custom_call.1} parent=1 // pred_check_branch
      %35 = sbr.rel (0) target = $region17
    $region16: #{tpu_custom_call.1} parent=1 // pred_region
      %37 = vsyncadd [#allocation6], 0
      %s39 = sshll.u32 %s3, 4
      %s40 = int_to_ptr.hbm [resolvable:$true] %s39
      %s41 = sshll.u32 [#allocation5], 4
      %s42 = int_to_ptr.vmem [resolvable:$true] %s41
      %44 = dma.hbm_to_vmem [thread:$0]  %s40, 16, %s42, [#allocation6]
    $region17: #{tpu_custom_call.1} parent=1 // pred_fallthru
      _
    // Predicated region
    $region18: #{tpu_custom_call.1} parent=1 // pred_check
      _
    $region19: #{tpu_custom_call.1} parent=1 // pred_check_branch
      %46 = sbr.rel (0) target = $region21
    $region20: #{tpu_custom_call.1} parent=1 // pred_region
      _
    $region21: #{tpu_custom_call.1} parent=1 // pred_fallthru
      _
    // Predicated region
    $region22: #{tpu_custom_call.1} parent=1 // pred_check
      _
    $region23: #{tpu_custom_call.1} parent=1 // pred_check_branch
      %48 = sbr.rel (0) target = $region25
    $region24: #{tpu_custom_call.1} parent=1 // pred_region
      _
    $region25: #{tpu_custom_call.1} parent=1 // pred_fallthru
      _
    // Predicated region
    $region26: #{tpu_custom_call.1} parent=1 // pred_check
      _
    $region27: #{tpu_custom_call.1} parent=1 // pred_check_branch
      %50 = sbr.rel (0) target = $region29
    $region28: #{tpu_custom_call.1} parent=1 // pred_region
      %52 = vsyncadd [#allocation6], 0
      %s53 = sshll.u32 %s6, 4
      %s54 = int_to_ptr.hbm [resolvable:$true] %s53
      %s55 = sshll.u32 [#allocation7], 4
      %s56 = int_to_ptr.vmem [resolvable:$true] %s55
      %61 = dma.hbm_to_vmem [thread:$0]  %s54, 10240, %s56, [#allocation6], 128, 128, 8
    $region29: #{tpu_custom_call.1} parent=1 // pred_fallthru
      _
    // Predicated region
    $region30: #{tpu_custom_call.1} parent=1 // pred_check
      _
    $region31: #{tpu_custom_call.1} parent=1 // pred_check_branch
      %63 = sbr.rel (0) target = $region33
    $region32: #{tpu_custom_call.1} parent=1 // pred_region
      %65 = vsyncadd [#allocation9], 0
      %s66 = sshll.u32 %s7, 4
      %s67 = int_to_ptr.hbm [resolvable:$true] %s66
      %s68 = sshll.u32 [#allocation8], 4
      %s69 = int_to_ptr.vmem [resolvable:$true] %s68
      %74 = dma.hbm_to_vmem [thread:$0]  %s67, 80, %s69, [#allocation9], 16, 16, 1
    $region33: #{tpu_custom_call.1} parent=1 // pred_fallthru
      _
    // Predicated region
    $region34: #{tpu_custom_call.1} parent=1 // pred_check
      _
    $region35: #{tpu_custom_call.1} parent=1 // pred_check_branch
      %76 = sbr.rel (0) target = $region37
    $region36: #{tpu_custom_call.1} parent=1 // pred_region
      %78 = dma.done [#allocation3], 384
    $region37: #{tpu_custom_call.1} parent=1 // pred_fallthru
      _
    // Predicated region
    $region38: #{tpu_custom_call.1} parent=1 // pred_check
      _
    $region39: #{tpu_custom_call.1} parent=1 // pred_check_branch
      %80 = sbr.rel (0) target = $region41
    $region40: #{tpu_custom_call.1} parent=1 // pred_region
      %82 = dma.done [#allocation6], 16
    $region41: #{tpu_custom_call.1} parent=1 // pred_fallthru
      _
    // Predicated region
    $region42: #{tpu_custom_call.1} parent=1 // pred_check
      _
    $region43: #{tpu_custom_call.1} parent=1 // pred_check_branch
      %84 = sbr.rel (0) target = $region45
    $region44: #{tpu_custom_call.1} parent=1 // pred_region
      %86 = dma.done [#allocation6], 10240
    $region45: #{tpu_custom_call.1} parent=1 // pred_fallthru
      _
    // Predicated region
    $region46: #{tpu_custom_call.1} parent=1 // pred_check
      _
    $region47: #{tpu_custom_call.1} parent=1 // pred_check_branch
      %88 = sbr.rel (0) target = $region49
    $region48: #{tpu_custom_call.1} parent=1 // pred_region
      %90 = dma.done [#allocation9], 80
    $region49: #{tpu_custom_call.1} parent=1 // pred_fallthru
      _
    %v91 = vld [vmem:[#allocation2] sm:$0xff]
    %v92 = vld [vmem:[#allocation2 + $0x8] sm:$0xff]
    %v93 = vld [vmem:[#allocation2 + $0x10] sm:$0xff]
    %v94 = vld [vmem:[%s1] sm:$0x1]
    %v95 = vld [vmem:[%s2] sm:$0xff]
    %v96 = vld [vmem:[%s2 + $0x8] sm:$0xff]
    %v97 = vld [vmem:[%s2 + $0x10] sm:$0xff]
    %v98 = vld [vmem:[%s2 + $0x18] sm:$0xff]
    %v99 = vld [vmem:[%s2 + $0x20] sm:$0xff]
    %v100 = vld [vmem:[%s2 + $0x28] sm:$0xff]
    %v101 = vld [vmem:[%s2 + $0x30] sm:$0xff]
    %v102 = vld [vmem:[%s2 + $0x38] sm:$0xff]
    %v103 = vld [vmem:[%s2 + $0x40] sm:$0xff]
    %v104 = vld [vmem:[%s2 + $0x48] sm:$0xff]
    %v105 = vld [vmem:[%s2 + $0x50] sm:$0xff]
    %v106 = vld [vmem:[%s2 + $0x58] sm:$0xff]
    %v107 = vld [vmem:[%s2 + $0x60] sm:$0xff]
    %v108 = vld [vmem:[%s2 + $0x68] sm:$0xff]
    %v109 = vld [vmem:[%s2 + $0x70] sm:$0xff]
    %v110 = vld [vmem:[%s2 + $0x78] sm:$0xff]
    %v111 = vld [vmem:[#allocation5] sm:$0x1]
    %v112 = vlaneseq
    %v113 = vshrl.u32 %v112, 7
    %v114 = vadd.s32 %v113, 8
    %v115 = vadd.s32 %v113, 16
    %v116 = vperm.slane %v94, 0
    %vm117 = vcmp.eq.s32.totalorder %v113, %v116
    %vm118 = vcmp.eq.s32.totalorder %v114, %v116
    %vm119 = vcmp.eq.s32.totalorder %v115, %v116
    %v120 = vsel %vm117, 1, 0
    %v121 = vsel %vm118, 1, 0
    %v122 = vsel %vm119, 1, 0
    %v123 = vcvt.s32.f32 %v120
    %v124 = vcvt.s32.f32 %v121
    %v125 = vcvt.s32.f32 %v122
    %v126 = vlaneseq
    %v127 = vand.u32 %v126, 127
    %128 = vset.pattern.permute.xlu0 0
    %129 = vperm.xlu0 %128, %v95
    %v130 = vpop.permute.xlu0 %129
    %131 = vset.pattern.permute.xlu0 0
    %132 = vperm.xlu0 %131, %v96
    %v133 = vpop.permute.xlu0 %132
    %134 = vset.pattern.permute.xlu0 0
    %135 = vperm.xlu0 %134, %v97
    %v136 = vpop.permute.xlu0 %135
    %137 = vset.pattern.permute.xlu0 0
    %138 = vperm.xlu0 %137, %v98
    %v139 = vpop.permute.xlu0 %138
    %140 = vset.pattern.permute.xlu0 0
    %141 = vperm.xlu0 %140, %v99
    %v142 = vpop.permute.xlu0 %141
    %143 = vset.pattern.permute.xlu0 0
    %144 = vperm.xlu0 %143, %v100
    %v145 = vpop.permute.xlu0 %144
    %146 = vset.pattern.permute.xlu0 0
    %147 = vperm.xlu0 %146, %v101
    %v148 = vpop.permute.xlu0 %147
    %149 = vset.pattern.permute.xlu0 0
    %150 = vperm.xlu0 %149, %v102
    %v151 = vpop.permute.xlu0 %150
    %152 = vset.pattern.permute.xlu0 0
    %153 = vperm.xlu0 %152, %v103
    %v154 = vpop.permute.xlu0 %153
    %155 = vset.pattern.permute.xlu0 0
    %156 = vperm.xlu0 %155, %v104
    %v157 = vpop.permute.xlu0 %156
    %158 = vset.pattern.permute.xlu0 0
    %159 = vperm.xlu0 %158, %v105
    %v160 = vpop.permute.xlu0 %159
    %161 = vset.pattern.permute.xlu0 0
    %162 = vperm.xlu0 %161, %v106
    %v163 = vpop.permute.xlu0 %162
    %164 = vset.pattern.permute.xlu0 0
    %165 = vperm.xlu0 %164, %v107
    %v166 = vpop.permute.xlu0 %165
    %167 = vset.pattern.permute.xlu0 0
    %168 = vperm.xlu0 %167, %v108
    %v169 = vpop.permute.xlu0 %168
    %170 = vset.pattern.permute.xlu0 0
    %171 = vperm.xlu0 %170, %v109
    %v172 = vpop.permute.xlu0 %171
    %173 = vset.pattern.permute.xlu0 0
    %174 = vperm.xlu0 %173, %v110
    %v175 = vpop.permute.xlu0 %174
    %vm176 = vcmp.eq.s32.totalorder %v127, %v130
    %vm177 = vcmp.eq.s32.totalorder %v127, %v133
    %vm178 = vcmp.eq.s32.totalorder %v127, %v136
    %vm179 = vcmp.eq.s32.totalorder %v127, %v139
    %vm180 = vcmp.eq.s32.totalorder %v127, %v142
    %vm181 = vcmp.eq.s32.totalorder %v127, %v145
    %vm182 = vcmp.eq.s32.totalorder %v127, %v148
    %vm183 = vcmp.eq.s32.totalorder %v127, %v151
    %vm184 = vcmp.eq.s32.totalorder %v127, %v154
    %vm185 = vcmp.eq.s32.totalorder %v127, %v157
    %vm186 = vcmp.eq.s32.totalorder %v127, %v160
    %vm187 = vcmp.eq.s32.totalorder %v127, %v163
    %vm188 = vcmp.eq.s32.totalorder %v127, %v166
    %vm189 = vcmp.eq.s32.totalorder %v127, %v169
    %vm190 = vcmp.eq.s32.totalorder %v127, %v172
    %vm191 = vcmp.eq.s32.totalorder %v127, %v175
    %v192 = vsel %vm176, 1, 0
    %v193 = vsel %vm177, 1, 0
    %v194 = vsel %vm178, 1, 0
    %v195 = vsel %vm179, 1, 0
    %v196 = vsel %vm180, 1, 0
    %v197 = vsel %vm181, 1, 0
    %v198 = vsel %vm182, 1, 0
    %v199 = vsel %vm183, 1, 0
    %v200 = vsel %vm184, 1, 0
    %v201 = vsel %vm185, 1, 0
    %v202 = vsel %vm186, 1, 0
    %v203 = vsel %vm187, 1, 0
    %v204 = vsel %vm188, 1, 0
    %v205 = vsel %vm189, 1, 0
    %v206 = vsel %vm190, 1, 0
    %v207 = vsel %vm191, 1, 0
    %v208 = vcvt.s32.f32 %v192
    %v209 = vcvt.s32.f32 %v193
    %v210 = vcvt.s32.f32 %v194
    %v211 = vcvt.s32.f32 %v195
    %v212 = vcvt.s32.f32 %v196
    %v213 = vcvt.s32.f32 %v197
    %v214 = vcvt.s32.f32 %v198
    %v215 = vcvt.s32.f32 %v199
    %v216 = vcvt.s32.f32 %v200
    %v217 = vcvt.s32.f32 %v201
    %v218 = vcvt.s32.f32 %v202
    %v219 = vcvt.s32.f32 %v203
    %v220 = vcvt.s32.f32 %v204
    %v221 = vcvt.s32.f32 %v205
    %v222 = vcvt.s32.f32 %v206
    %v223 = vcvt.s32.f32 %v207
    %vm224 = vcmp.eq.s32.totalorder %v113, %v127
    %vm225 = vcmp.eq.s32.totalorder %v114, %v127
    %vm226 = vcmp.eq.s32.totalorder %v115, %v127
    %v227 = vsel %vm224, 1, 0
    %v228 = vsel %vm225, 1, 0
    %v229 = vsel %vm226, 1, 0
    %v230 = vcvt.s32.f32 %v227
    %v231 = vcvt.s32.f32 %v228
    %v232 = vcvt.s32.f32 %v229
    %v233 = vmul.f32 %v230, 2.0
    %v234 = vmul.f32 %v231, 2.0
    %v235 = vmul.f32 %v232, 2.0
    %236 = vmatpush.msra.mxu0 %v223
    %237 = vmatpush.msra.mxu0 %v222
    %238 = vmatpush.msra.mxu0 %v221
    %239 = vmatpush.msra.mxu0 %v220
    %240 = vmatpush.msra.mxu0 %v219
    %241 = vmatpush.msra.mxu0 %v218
    %242 = vmatpush.msra.mxu0 %v217
    %243 = vmatpush.msra.mxu0 %v216
    %244 = vmatpush.msra.mxu0 %v215
    %245 = vmatpush.msra.mxu0 %v214
    %246 = vmatpush.msra.mxu0 %v213
    %247 = vmatpush.msra.mxu0 %v212
    %248 = vmatpush.msra.mxu0 %v211
    %249 = vmatpush.msra.mxu0 %v210
    %250 = vmatpush.msra.mxu0 %v209
    %251 = vmatpush.msra.mxu0 %v208
    %252 = vmatmul.f32.gmra.mxu0 %v123
    %v253 = vpop.f32.mrf.mxu0
    %v254 = vadd.f32 %v233, %v253
    %255 = vmatmul.f32.gmra.mxu0 %v124
    %v256 = vpop.f32.mrf.mxu0
    %v257 = vadd.f32 %v234, %v256
    %258 = vmatmul.f32.gmra.mxu0 %v125
    %v259 = vpop.f32.mrf.mxu0
    %v260 = vadd.f32 %v235, %v259
    %261 = vdwg.mxu0
    %vm262 = vcmask 195584
    %v263 = vsel %vm262, %v254, 0.0
    %264 = vadd.xlane.f32.xlu0 %v263
    %v265 = vpop.xlane.xlu0 %264
    %v266 = vsel %vm262, %v257, 0.0
    %267 = vadd.xlane.f32.xlu0 %v266
    %v268 = vpop.xlane.xlu0 %267
    %v269 = vsel %vm262, %v260, 0.0
    %270 = vadd.xlane.f32.xlu0 %v269
    %v271 = vpop.xlane.xlu0 %270
    %v272 = vadd.f32 %v263, %v266
    %v273 = vadd.f32 %v272, %v269
    %v274 = vrot.slane %v273, 4
    %v275 = vadd.f32 %v273, %v274
    %v276 = vrot.slane %v275, 2
    %v277 = vadd.f32 %v275, %v276
    %v278 = vrot.slane %v277, 1
    %v279 = vadd.f32 %v277, %v278
    %v280 = vrsqrt.pop %v265
    %v281 = vmul.f32 %v280, %v265
    %v282 = vmul.f32 %v281, %v280
    %v283 = vmul.f32 0.5, %v282
    %v284 = vsub.f32 1.5, %v283
    %v285 = vmul.f32 %v280, %v284
    %vm286 = vweird.f32 %v265
    %vm287 = vweird.f32 %v280
    %vm288 = vmor %vm286, %vm287
    %v289 = vsel %vm288, %v280, %v285
    %v290 = vrsqrt.pop %v268
    %v291 = vmul.f32 %v290, %v268
    %v292 = vmul.f32 %v291, %v290
    %v293 = vmul.f32 0.5, %v292
    %v294 = vsub.f32 1.5, %v293
    %v295 = vmul.f32 %v290, %v294
    %vm296 = vweird.f32 %v268
    %vm297 = vweird.f32 %v290
    %vm298 = vmor %vm296, %vm297
    %v299 = vsel %vm298, %v290, %v295
    %v300 = vrsqrt.pop %v271
    %v301 = vmul.f32 %v300, %v271
    %v302 = vmul.f32 %v301, %v300
    %v303 = vmul.f32 0.5, %v302
    %v304 = vsub.f32 1.5, %v303
    %v305 = vmul.f32 %v300, %v304
    %vm306 = vweird.f32 %v271
    %vm307 = vweird.f32 %v300
    %vm308 = vmor %vm306, %vm307
    %v309 = vsel %vm308, %v300, %v305
    %v310 = vmul.f32 %v289, %v254
    %v311 = vmul.f32 %v299, %v257
    %v312 = vmul.f32 %v309, %v260
    %v313 = vrsqrt.pop %v279
    %v314 = vmul.f32 %v313, %v279
    %v315 = vmul.f32 %v314, %v313
    %v316 = vmul.f32 0.5, %v315
    %v317 = vsub.f32 1.5, %v316
    %v318 = vmul.f32 %v313, %v317
    %vm319 = vweird.f32 %v279
    %vm320 = vweird.f32 %v313
    %vm321 = vmor %vm319, %vm320
    %v322 = vsel %vm321, %v313, %v318
    %v323 = vmul.f32 %v310, %v322
    %v324 = vmul.f32 %v311, %v322
    %v325 = vmul.f32 %v312, %v322
    %v326 = vadd.f32 %v91, 1.0
    %v327 = vadd.f32 %v92, 1.0
    %v328 = vadd.f32 %v93, 1.0
    %v329 = vlog2.pop %v326
    %v330 = vmul.f32 %v329, 0.6931472
    %v331 = vlog2.pop %v327
    %v332 = vmul.f32 %v331, 0.6931472
    %v333 = vlog2.pop %v328
    %v334 = vmul.f32 %v333, 0.6931472
    %v335 = vld [vmem:[%s4] sm:$0xff]
    %v336 = vld [vmem:[%s4 + $0x8] sm:$0xff]
    %v337 = vld [vmem:[%s4 + $0x10] sm:$0xff]
    %v338 = vld [vmem:[%s4 + $0x18] sm:$0xff]
    %v339 = vld [vmem:[%s4 + $0x20] sm:$0xff]
    %v340 = vld [vmem:[%s4 + $0x28] sm:$0xff]
    %v341 = vld [vmem:[%s4 + $0x30] sm:$0xff]
    %v342 = vld [vmem:[%s4 + $0x38] sm:$0xff]
    %v343 = vld [vmem:[%s4 + $0x40] sm:$0xff]
    %v344 = vld [vmem:[%s4 + $0x48] sm:$0xff]
    %v345 = vld [vmem:[%s4 + $0x50] sm:$0xff]
    %v346 = vld [vmem:[%s4 + $0x58] sm:$0xff]
    %v347 = vld [vmem:[%s4 + $0x60] sm:$0xff]
    %v348 = vld [vmem:[%s4 + $0x68] sm:$0xff]
    %v349 = vld [vmem:[%s4 + $0x70] sm:$0xff]
    %v350 = vld [vmem:[%s4 + $0x78] sm:$0xff]
    %v351 = vld [vmem:[%s5] sm:$0x1]
    %v353 = vperm.slane %v351, 0
    %355 = vmatpush.msra.mxu0 %v350
    %356 = vmatpush.msra.mxu0 %v349
    %357 = vmatpush.msra.mxu0 %v348
    %358 = vmatpush.msra.mxu0 %v347
    %359 = vmatpush.msra.mxu0 %v346
    %360 = vmatpush.msra.mxu0 %v345
    %361 = vmatpush.msra.mxu0 %v344
    %362 = vmatpush.msra.mxu0 %v343
    %363 = vmatpush.msra.mxu0 %v342
    %364 = vmatpush.msra.mxu0 %v341
    %365 = vmatpush.msra.mxu0 %v340
    %366 = vmatpush.msra.mxu0 %v339
    %367 = vmatpush.msra.mxu0 %v338
    %368 = vmatpush.msra.mxu0 %v337
    %369 = vmatpush.msra.mxu0 %v336
    %370 = vmatpush.msra.mxu0 %v335
    %371 = vmatmul.f32.gmra.mxu0 %v330
    %v372 = vpop.f32.mrf.mxu0
    %v373 = vadd.f32 %v353, %v372
    %374 = vmatmul.f32.gmra.mxu0 %v332
    %v375 = vpop.f32.mrf.mxu0
    %v376 = vadd.f32 %v353, %v375
    %377 = vmatmul.f32.gmra.mxu0 %v334
    %v378 = vpop.f32.mrf.mxu0
    %v379 = vadd.f32 %v353, %v378
    %380 = vdwg.mxu0
    %v381 = vld [vmem:[#allocation7] sm:$0xff]
    %v382 = vld [vmem:[#allocation7 + $0x8] sm:$0xff]
    %v383 = vld [vmem:[#allocation7 + $0x10] sm:$0xff]
    %v384 = vld [vmem:[#allocation7 + $0x18] sm:$0xff]
    %v385 = vld [vmem:[#allocation7 + $0x20] sm:$0xff]
    %v386 = vld [vmem:[#allocation7 + $0x28] sm:$0xff]
    %v387 = vld [vmem:[#allocation7 + $0x30] sm:$0xff]
    %v388 = vld [vmem:[#allocation7 + $0x38] sm:$0xff]
    %v389 = vld [vmem:[#allocation7 + $0x40] sm:$0xff]
    %v390 = vld [vmem:[#allocation7 + $0x48] sm:$0xff]
    %v391 = vld [vmem:[#allocation7 + $0x50] sm:$0xff]
    %v392 = vld [vmem:[#allocation7 + $0x58] sm:$0xff]
    %v393 = vld [vmem:[#allocation7 + $0x60] sm:$0xff]
    %v394 = vld [vmem:[#allocation7 + $0x68] sm:$0xff]
    %v395 = vld [vmem:[#allocation7 + $0x70] sm:$0xff]
    %v396 = vld [vmem:[#allocation7 + $0x78] sm:$0xff]
    %397 = vmatpush.msra.mxu0 %v396
    %398 = vmatpush.msra.mxu0 %v395
    %399 = vmatpush.msra.mxu0 %v394
    %400 = vmatpush.msra.mxu0 %v393
    %401 = vmatpush.msra.mxu0 %v392
    %402 = vmatpush.msra.mxu0 %v391
    %403 = vmatpush.msra.mxu0 %v390
    %404 = vmatpush.msra.mxu0 %v389
    %405 = vmatpush.msra.mxu0 %v388
    %406 = vmatpush.msra.mxu0 %v387
    %407 = vmatpush.msra.mxu0 %v386
    %408 = vmatpush.msra.mxu0 %v385
    %409 = vmatpush.msra.mxu0 %v384
    %410 = vmatpush.msra.mxu0 %v383
    %411 = vmatpush.msra.mxu0 %v382
    %412 = vmatpush.msra.mxu0 %v381
    %413 = vmatmul.f32.gmra.mxu0 %v373
    %v414 = vpop.f32.mrf.mxu0
    %v415 = vadd.f32 0.0, %v414
    %416 = vmatmul.f32.gmra.mxu0 %v376
    %v417 = vpop.f32.mrf.mxu0
    %v418 = vadd.f32 0.0, %v417
    %419 = vmatmul.f32.gmra.mxu0 %v379
    %v420 = vpop.f32.mrf.mxu0
    %v421 = vadd.f32 0.0, %v420
    %422 = vdwg.mxu0
    %v423 = vld [vmem:[#allocation8] sm:$0x1]
    %v425 = vperm.slane %v423, 0
    %v428 = vsel %vm262, %v323, 0
    %v431 = vsel %vm262, %v324, 0
    %v434 = vsel %vm262, %v325, 0
    %436 = vmatpush.msra.mxu0 0.0
    %437 = vmatpush.msra.mxu0 0.0
    %438 = vmatpush.msra.mxu0 0.0
    %439 = vmatpush.msra.mxu0 0.0
    %440 = vmatpush.msra.mxu0 0.0
    %441 = vmatpush.msra.mxu0 0.0
    %442 = vmatpush.msra.mxu0 0.0
    %443 = vmatpush.msra.mxu0 0.0
    %444 = vmatpush.msra.mxu0 0.0
    %445 = vmatpush.msra.mxu0 0.0
    %446 = vmatpush.msra.mxu0 0.0
    %447 = vmatpush.msra.mxu0 0.0
    %448 = vmatpush.msra.mxu0 0.0
    %449 = vmatpush.msra.mxu0 %v421
    %450 = vmatpush.msra.mxu0 %v418
    %451 = vmatpush.msra.mxu0 %v415
    %452 = vmatmul.f32.gmra.mxu0 %v428
    %v453 = vpop.f32.mrf.mxu0
    %v454 = vadd.f32 %v425, %v453
    %455 = vmatmul.f32.gmra.mxu0 %v431
    %v456 = vpop.f32.mrf.mxu0
    %v457 = vadd.f32 %v425, %v456
    %458 = vmatmul.f32.gmra.mxu0 %v434
    %v459 = vpop.f32.mrf.mxu0
    %v460 = vadd.f32 %v425, %v459
    %461 = vdwg.mxu0
    %v462 = vmax.f32 %v454, 0.0
    %v463 = vmax.f32 %v457, 0.0
    %v464 = vmax.f32 %v460, 0.0
    %s465 = scalar_lea.vmem [#allocation7], 128
    %v466 = vld [vmem:[%s465] sm:$0xff]
    %v467 = vld [vmem:[%s465 + $0x8] sm:$0xff]
    %v468 = vld [vmem:[%s465 + $0x10] sm:$0xff]
    %v469 = vld [vmem:[%s465 + $0x18] sm:$0xff]
    %v470 = vld [vmem:[%s465 + $0x20] sm:$0xff]
    %v471 = vld [vmem:[%s465 + $0x28] sm:$0xff]
    %v472 = vld [vmem:[%s465 + $0x30] sm:$0xff]
    %v473 = vld [vmem:[%s465 + $0x38] sm:$0xff]
    %v474 = vld [vmem:[%s465 + $0x40] sm:$0xff]
    %v475 = vld [vmem:[%s465 + $0x48] sm:$0xff]
    %v476 = vld [vmem:[%s465 + $0x50] sm:$0xff]
    %v477 = vld [vmem:[%s465 + $0x58] sm:$0xff]
    %v478 = vld [vmem:[%s465 + $0x60] sm:$0xff]
    %v479 = vld [vmem:[%s465 + $0x68] sm:$0xff]
    %v480 = vld [vmem:[%s465 + $0x70] sm:$0xff]
    %v481 = vld [vmem:[%s465 + $0x78] sm:$0xff]
    %482 = vmatpush.msra.mxu0 %v481
    %483 = vmatpush.msra.mxu0 %v480
    %484 = vmatpush.msra.mxu0 %v479
    %485 = vmatpush.msra.mxu0 %v478
    %486 = vmatpush.msra.mxu0 %v477
    %487 = vmatpush.msra.mxu0 %v476
    %488 = vmatpush.msra.mxu0 %v475
    %489 = vmatpush.msra.mxu0 %v474
    %490 = vmatpush.msra.mxu0 %v473
    %491 = vmatpush.msra.mxu0 %v472
    %492 = vmatpush.msra.mxu0 %v471
    %493 = vmatpush.msra.mxu0 %v470
    %494 = vmatpush.msra.mxu0 %v469
    %495 = vmatpush.msra.mxu0 %v468
    %496 = vmatpush.msra.mxu0 %v467
    %497 = vmatpush.msra.mxu0 %v466
    %498 = vmatmul.f32.gmra.mxu0 %v462
    %v499 = vpop.f32.mrf.mxu0
    %v500 = vadd.f32 0.0, %v499
    %501 = vmatmul.f32.gmra.mxu0 %v463
    %v502 = vpop.f32.mrf.mxu0
    %v503 = vadd.f32 0.0, %v502
    %504 = vmatmul.f32.gmra.mxu0 %v464
    %v505 = vpop.f32.mrf.mxu0
    %v506 = vadd.f32 0.0, %v505
    %507 = vdwg.mxu0
    %s508 = scalar_lea.vmem [#allocation8], 1
    %v509 = vld [vmem:[%s508] sm:$0x1]
    %v511 = vperm.slane %v509, 0
    %513 = vmatpush.msra.mxu0 0.0
    %514 = vmatpush.msra.mxu0 0.0
    %515 = vmatpush.msra.mxu0 0.0
    %516 = vmatpush.msra.mxu0 0.0
    %517 = vmatpush.msra.mxu0 0.0
    %518 = vmatpush.msra.mxu0 0.0
    %519 = vmatpush.msra.mxu0 0.0
    %520 = vmatpush.msra.mxu0 0.0
    %521 = vmatpush.msra.mxu0 0.0
    %522 = vmatpush.msra.mxu0 0.0
    %523 = vmatpush.msra.mxu0 0.0
    %524 = vmatpush.msra.mxu0 0.0
    %525 = vmatpush.msra.mxu0 0.0
    %526 = vmatpush.msra.mxu0 %v506
    %527 = vmatpush.msra.mxu0 %v503
    %528 = vmatpush.msra.mxu0 %v500
    %529 = vmatmul.f32.gmra.mxu0 %v428
    %v530 = vpop.f32.mrf.mxu0
    %v531 = vadd.f32 %v511, %v530
    %532 = vmatmul.f32.gmra.mxu0 %v431
    %v533 = vpop.f32.mrf.mxu0
    %v534 = vadd.f32 %v511, %v533
    %535 = vmatmul.f32.gmra.mxu0 %v434
    %v536 = vpop.f32.mrf.mxu0
    %v537 = vadd.f32 %v511, %v536
    %538 = vdwg.mxu0
    %v539 = vmax.f32 %v531, 0.0
    %v540 = vmax.f32 %v534, 0.0
    %v541 = vmax.f32 %v537, 0.0
    %s542 = scalar_lea.vmem [#allocation7], 256
    %v543 = vld [vmem:[%s542] sm:$0xff]
    %v544 = vld [vmem:[%s542 + $0x8] sm:$0xff]
    %v545 = vld [vmem:[%s542 + $0x10] sm:$0xff]
    %v546 = vld [vmem:[%s542 + $0x18] sm:$0xff]
    %v547 = vld [vmem:[%s542 + $0x20] sm:$0xff]
    %v548 = vld [vmem:[%s542 + $0x28] sm:$0xff]
    %v549 = vld [vmem:[%s542 + $0x30] sm:$0xff]
    %v550 = vld [vmem:[%s542 + $0x38] sm:$0xff]
    %v551 = vld [vmem:[%s542 + $0x40] sm:$0xff]
    %v552 = vld [vmem:[%s542 + $0x48] sm:$0xff]
    %v553 = vld [vmem:[%s542 + $0x50] sm:$0xff]
    %v554 = vld [vmem:[%s542 + $0x58] sm:$0xff]
    %v555 = vld [vmem:[%s542 + $0x60] sm:$0xff]
    %v556 = vld [vmem:[%s542 + $0x68] sm:$0xff]
    %v557 = vld [vmem:[%s542 + $0x70] sm:$0xff]
    %v558 = vld [vmem:[%s542 + $0x78] sm:$0xff]
    %559 = vmatpush.msra.mxu0 %v558
    %560 = vmatpush.msra.mxu0 %v557
    %561 = vmatpush.msra.mxu0 %v556
    %562 = vmatpush.msra.mxu0 %v555
    %563 = vmatpush.msra.mxu0 %v554
    %564 = vmatpush.msra.mxu0 %v553
    %565 = vmatpush.msra.mxu0 %v552
    %566 = vmatpush.msra.mxu0 %v551
    %567 = vmatpush.msra.mxu0 %v550
    %568 = vmatpush.msra.mxu0 %v549
    %569 = vmatpush.msra.mxu0 %v548
    %570 = vmatpush.msra.mxu0 %v547
    %571 = vmatpush.msra.mxu0 %v546
    %572 = vmatpush.msra.mxu0 %v545
    %573 = vmatpush.msra.mxu0 %v544
    %574 = vmatpush.msra.mxu0 %v543
    %575 = vmatmul.f32.gmra.mxu0 %v539
    %v576 = vpop.f32.mrf.mxu0
    %v577 = vadd.f32 0.0, %v576
    %578 = vmatmul.f32.gmra.mxu0 %v540
    %v579 = vpop.f32.mrf.mxu0
    %v580 = vadd.f32 0.0, %v579
    %581 = vmatmul.f32.gmra.mxu0 %v541
    %v582 = vpop.f32.mrf.mxu0
    %v583 = vadd.f32 0.0, %v582
    %584 = vdwg.mxu0
    %s585 = scalar_lea.vmem [#allocation8], 2
    %v586 = vld [vmem:[%s585] sm:$0x1]
    %v588 = vperm.slane %v586, 0
    %590 = vmatpush.msra.mxu0 0.0
    %591 = vmatpush.msra.mxu0 0.0
    %592 = vmatpush.msra.mxu0 0.0
    %593 = vmatpush.msra.mxu0 0.0
    %594 = vmatpush.msra.mxu0 0.0
    %595 = vmatpush.msra.mxu0 0.0
    %596 = vmatpush.msra.mxu0 0.0
    %597 = vmatpush.msra.mxu0 0.0
    %598 = vmatpush.msra.mxu0 0.0
    %599 = vmatpush.msra.mxu0 0.0
    %600 = vmatpush.msra.mxu0 0.0
    %601 = vmatpush.msra.mxu0 0.0
    %602 = vmatpush.msra.mxu0 0.0
    %603 = vmatpush.msra.mxu0 %v583
    %604 = vmatpush.msra.mxu0 %v580
    %605 = vmatpush.msra.mxu0 %v577
    %606 = vmatmul.f32.gmra.mxu0 %v428
    %v607 = vpop.f32.mrf.mxu0
    %v608 = vadd.f32 %v588, %v607
    %609 = vmatmul.f32.gmra.mxu0 %v431
    %v610 = vpop.f32.mrf.mxu0
    %v611 = vadd.f32 %v588, %v610
    %612 = vmatmul.f32.gmra.mxu0 %v434
    %v613 = vpop.f32.mrf.mxu0
    %v614 = vadd.f32 %v588, %v613
    %615 = vdwg.mxu0
    %v616 = vmax.f32 %v608, 0.0
    %v617 = vmax.f32 %v611, 0.0
    %v618 = vmax.f32 %v614, 0.0
    %s619 = scalar_lea.vmem [#allocation7], 384
    %v620 = vld [vmem:[%s619] sm:$0xff]
    %v621 = vld [vmem:[%s619 + $0x8] sm:$0xff]
    %v622 = vld [vmem:[%s619 + $0x10] sm:$0xff]
    %v623 = vld [vmem:[%s619 + $0x18] sm:$0xff]
    %v624 = vld [vmem:[%s619 + $0x20] sm:$0xff]
    %v625 = vld [vmem:[%s619 + $0x28] sm:$0xff]
    %v626 = vld [vmem:[%s619 + $0x30] sm:$0xff]
    %v627 = vld [vmem:[%s619 + $0x38] sm:$0xff]
    %v628 = vld [vmem:[%s619 + $0x40] sm:$0xff]
    %v629 = vld [vmem:[%s619 + $0x48] sm:$0xff]
    %v630 = vld [vmem:[%s619 + $0x50] sm:$0xff]
    %v631 = vld [vmem:[%s619 + $0x58] sm:$0xff]
    %v632 = vld [vmem:[%s619 + $0x60] sm:$0xff]
    %v633 = vld [vmem:[%s619 + $0x68] sm:$0xff]
    %v634 = vld [vmem:[%s619 + $0x70] sm:$0xff]
    %v635 = vld [vmem:[%s619 + $0x78] sm:$0xff]
    %636 = vmatpush.msra.mxu0 %v635
    %637 = vmatpush.msra.mxu0 %v634
    %638 = vmatpush.msra.mxu0 %v633
    %639 = vmatpush.msra.mxu0 %v632
    %640 = vmatpush.msra.mxu0 %v631
    %641 = vmatpush.msra.mxu0 %v630
    %642 = vmatpush.msra.mxu0 %v629
    %643 = vmatpush.msra.mxu0 %v628
    %644 = vmatpush.msra.mxu0 %v627
    %645 = vmatpush.msra.mxu0 %v626
    %646 = vmatpush.msra.mxu0 %v625
    %647 = vmatpush.msra.mxu0 %v624
    %648 = vmatpush.msra.mxu0 %v623
    %649 = vmatpush.msra.mxu0 %v622
    %650 = vmatpush.msra.mxu0 %v621
    %651 = vmatpush.msra.mxu0 %v620
    %652 = vmatmul.f32.gmra.mxu0 %v616
    %v653 = vpop.f32.mrf.mxu0
    %v654 = vadd.f32 0.0, %v653
    %655 = vmatmul.f32.gmra.mxu0 %v617
    %v656 = vpop.f32.mrf.mxu0
    %v657 = vadd.f32 0.0, %v656
    %658 = vmatmul.f32.gmra.mxu0 %v618
    %v659 = vpop.f32.mrf.mxu0
    %v660 = vadd.f32 0.0, %v659
    %661 = vdwg.mxu0
    %s662 = scalar_lea.vmem [#allocation8], 3
    %v663 = vld [vmem:[%s662] sm:$0x1]
    %v665 = vperm.slane %v663, 0
    %667 = vmatpush.msra.mxu0 0.0
    %668 = vmatpush.msra.mxu0 0.0
    %669 = vmatpush.msra.mxu0 0.0
    %670 = vmatpush.msra.mxu0 0.0
    %671 = vmatpush.msra.mxu0 0.0
    %672 = vmatpush.msra.mxu0 0.0
    %673 = vmatpush.msra.mxu0 0.0
    %674 = vmatpush.msra.mxu0 0.0
    %675 = vmatpush.msra.mxu0 0.0
    %676 = vmatpush.msra.mxu0 0.0
    %677 = vmatpush.msra.mxu0 0.0
    %678 = vmatpush.msra.mxu0 0.0
    %679 = vmatpush.msra.mxu0 0.0
    %680 = vmatpush.msra.mxu0 %v660
    %681 = vmatpush.msra.mxu0 %v657
    %682 = vmatpush.msra.mxu0 %v654
    %683 = vmatmul.f32.gmra.mxu0 %v428
    %v684 = vpop.f32.mrf.mxu0
    %v685 = vadd.f32 %v665, %v684
    %686 = vmatmul.f32.gmra.mxu0 %v431
    %v687 = vpop.f32.mrf.mxu0
    %v688 = vadd.f32 %v665, %v687
    %689 = vmatmul.f32.gmra.mxu0 %v434
    %v690 = vpop.f32.mrf.mxu0
    %v691 = vadd.f32 %v665, %v690
    %692 = vdwg.mxu0
    %v693 = vmax.f32 %v685, 0.0
    %v694 = vmax.f32 %v688, 0.0
    %v695 = vmax.f32 %v691, 0.0
    %s696 = scalar_lea.vmem [#allocation7], 512
    %v697 = vld [vmem:[%s696] sm:$0xff]
    %v698 = vld [vmem:[%s696 + $0x8] sm:$0xff]
    %v699 = vld [vmem:[%s696 + $0x10] sm:$0xff]
    %v700 = vld [vmem:[%s696 + $0x18] sm:$0xff]
    %v701 = vld [vmem:[%s696 + $0x20] sm:$0xff]
    %v702 = vld [vmem:[%s696 + $0x28] sm:$0xff]
    %v703 = vld [vmem:[%s696 + $0x30] sm:$0xff]
    %v704 = vld [vmem:[%s696 + $0x38] sm:$0xff]
    %v705 = vld [vmem:[%s696 + $0x40] sm:$0xff]
    %v706 = vld [vmem:[%s696 + $0x48] sm:$0xff]
    %v707 = vld [vmem:[%s696 + $0x50] sm:$0xff]
    %v708 = vld [vmem:[%s696 + $0x58] sm:$0xff]
    %v709 = vld [vmem:[%s696 + $0x60] sm:$0xff]
    %v710 = vld [vmem:[%s696 + $0x68] sm:$0xff]
    %v711 = vld [vmem:[%s696 + $0x70] sm:$0xff]
    %v712 = vld [vmem:[%s696 + $0x78] sm:$0xff]
    %713 = vmatpush.msra.mxu0 %v712
    %714 = vmatpush.msra.mxu0 %v711
    %715 = vmatpush.msra.mxu0 %v710
    %716 = vmatpush.msra.mxu0 %v709
    %717 = vmatpush.msra.mxu0 %v708
    %718 = vmatpush.msra.mxu0 %v707
    %719 = vmatpush.msra.mxu0 %v706
    %720 = vmatpush.msra.mxu0 %v705
    %721 = vmatpush.msra.mxu0 %v704
    %722 = vmatpush.msra.mxu0 %v703
    %723 = vmatpush.msra.mxu0 %v702
    %724 = vmatpush.msra.mxu0 %v701
    %725 = vmatpush.msra.mxu0 %v700
    %726 = vmatpush.msra.mxu0 %v699
    %727 = vmatpush.msra.mxu0 %v698
    %728 = vmatpush.msra.mxu0 %v697
    %729 = vmatmul.f32.gmra.mxu0 %v693
    %v730 = vpop.f32.mrf.mxu0
    %v731 = vadd.f32 0.0, %v730
    %732 = vmatmul.f32.gmra.mxu0 %v694
    %v733 = vpop.f32.mrf.mxu0
    %v734 = vadd.f32 0.0, %v733
    %735 = vmatmul.f32.gmra.mxu0 %v695
    %v736 = vpop.f32.mrf.mxu0
    %v737 = vadd.f32 0.0, %v736
    %738 = vdwg.mxu0
    %s739 = scalar_lea.vmem [#allocation8], 4
    %v740 = vld [vmem:[%s739] sm:$0x1]
    %v742 = vperm.slane %v740, 0
    %744 = vmatpush.msra.mxu0 0.0
    %745 = vmatpush.msra.mxu0 0.0
    %746 = vmatpush.msra.mxu0 0.0
    %747 = vmatpush.msra.mxu0 0.0
    %748 = vmatpush.msra.mxu0 0.0
    %749 = vmatpush.msra.mxu0 0.0
    %750 = vmatpush.msra.mxu0 0.0
    %751 = vmatpush.msra.mxu0 0.0
    %752 = vmatpush.msra.mxu0 0.0
    %753 = vmatpush.msra.mxu0 0.0
    %754 = vmatpush.msra.mxu0 0.0
    %755 = vmatpush.msra.mxu0 0.0
    %756 = vmatpush.msra.mxu0 0.0
    %757 = vmatpush.msra.mxu0 %v737
    %758 = vmatpush.msra.mxu0 %v734
    %759 = vmatpush.msra.mxu0 %v731
    %760 = vmatmul.f32.gmra.mxu0 %v428
    %v761 = vpop.f32.mrf.mxu0
    %v762 = vadd.f32 %v742, %v761
    %763 = vmatmul.f32.gmra.mxu0 %v431
    %v764 = vpop.f32.mrf.mxu0
    %v765 = vadd.f32 %v742, %v764
    %766 = vmatmul.f32.gmra.mxu0 %v434
    %v767 = vpop.f32.mrf.mxu0
    %v768 = vadd.f32 %v742, %v767
    %769 = vdwg.mxu0
    %v770 = vmax.f32 %v762, 0.0
    %v771 = vmax.f32 %v765, 0.0
    %v772 = vmax.f32 %v768, 0.0
    %v773 = vadd.s32 %v113, 24
    %v774 = vperm.slane %v111, 0
    %vm775 = vcmp.eq.s32.totalorder %v113, %v774
    %vm776 = vcmp.eq.s32.totalorder %v114, %v774
    %vm777 = vcmp.eq.s32.totalorder %v115, %v774
    %vm778 = vcmp.eq.s32.totalorder %v773, %v774
    %v779 = vsel %vm775, 1, 0
    %v780 = vsel %vm776, 1, 0
    %v781 = vsel %vm777, 1, 0
    %v782 = vsel %vm778, 1, 0
    %v783 = vcvt.s32.f32 %v779
    %v784 = vcvt.s32.f32 %v780
    %v785 = vcvt.s32.f32 %v781
    %v786 = vcvt.s32.f32 %v782
    %v787 = vsel %vm262, %v783, 0.0
    %788 = vadd.xlane.f32.xlu0 %v787
    %v789 = vpop.xlane.xlu0 %788
    %v790 = vsel %vm262, %v784, 0.0
    %791 = vadd.xlane.f32.xlu0 %v790
    %v792 = vpop.xlane.xlu0 %791
    %v793 = vsel %vm262, %v785, 0.0
    %794 = vadd.xlane.f32.xlu0 %v793
    %v795 = vpop.xlane.xlu0 %794
    %v796 = vsel %vm262, %v786, 0.0
    %797 = vadd.xlane.f32.xlu0 %v796
    %v798 = vpop.xlane.xlu0 %797
    %vm799 = vcmp.eq.s32.totalorder %v127, 32
    %v800 = vsel %vm799, 1, 0
    %v801 = vcvt.s32.f32 %v800
    %v802 = vmul.f32 %v789, %v801
    %v803 = vmul.f32 %v792, %v801
    %v804 = vmul.f32 %v795, %v801
    %v805 = vmul.f32 %v798, %v801
    %v807 = vsel %vm262, %v783, 0
    %v810 = vsel %vm262, %v784, 0
    %v813 = vsel %vm262, %v785, 0
    %v816 = vsel %vm262, %v786, 0
    %818 = vmatpush.msra.mxu0 0.0
    %819 = vmatpush.msra.mxu0 0.0
    %820 = vmatpush.msra.mxu0 0.0
    %821 = vmatpush.msra.mxu0 0.0
    %822 = vmatpush.msra.mxu0 0.0
    %823 = vmatpush.msra.mxu0 0.0
    %824 = vmatpush.msra.mxu0 0.0
    %825 = vmatpush.msra.mxu0 0.0
    %826 = vmatpush.msra.mxu0 0.0
    %827 = vmatpush.msra.mxu0 0.0
    %828 = vmatpush.msra.mxu0 0.0
    %829 = vmatpush.msra.mxu0 0.0
    %830 = vmatpush.msra.mxu0 0.0
    %831 = vmatpush.msra.mxu0 %v772
    %832 = vmatpush.msra.mxu0 %v771
    %833 = vmatpush.msra.mxu0 %v770
    %834 = vmatmul.f32.gmra.mxu0 %v807
    %v835 = vpop.f32.mrf.mxu0
    %v836 = vadd.f32 %v802, %v835
    %837 = vmatmul.f32.gmra.mxu0 %v810
    %v838 = vpop.f32.mrf.mxu0
    %v839 = vadd.f32 %v803, %v838
    %840 = vmatmul.f32.gmra.mxu0 %v813
    %v841 = vpop.f32.mrf.mxu0
    %v842 = vadd.f32 %v804, %v841
    %843 = vmatmul.f32.gmra.mxu0 %v816
    %v844 = vpop.f32.mrf.mxu0
    %v845 = vadd.f32 %v805, %v844
    %846 = vdwg.mxu0
    %847 = vst [vmem:[#allocation10] sm:$0xff] %v836
    %848 = vst [vmem:[#allocation10 + $0x8] sm:$0xff] %v839
    %849 = vst [vmem:[#allocation10 + $0x10] sm:$0xff] %v842
    %850 = vst [vmem:[#allocation10 + $0x18] sm:$0xff] %v845
    // Predicated region
    $region50: #{tpu_custom_call.1} parent=1 // pred_check
      _
    $region51: #{tpu_custom_call.1} parent=1 // pred_check_branch
      %852 = sbr.rel (0) target = $region53
    $region52: #{tpu_custom_call.1} parent=1 // pred_region
      %854 = vsyncadd [#allocation4], 0
      %s855 = sshll.u32 [#allocation10], 4
      %s856 = int_to_ptr.vmem [resolvable:$true] %s855
      %s857 = sshll.u32 %s8, 4
      %s858 = int_to_ptr.hbm [resolvable:$true] %s857
      %863 = dma.vmem_to_hbm [thread:$0]  %s856, 512, %s858, [#allocation4], 128, 128, 8
    $region53: #{tpu_custom_call.1} parent=1 // pred_fallthru
      _
    // Predicated region
    $region54: #{tpu_custom_call.1} parent=1 // pred_check
      _
    $region55: #{tpu_custom_call.1} parent=1 // pred_check_branch
      %865 = sbr.rel (0) target = $region57
    $region56: #{tpu_custom_call.1} parent=1 // pred_region
      %867 = dma.done [#allocation4], 512
    $region57: #{tpu_custom_call.1} parent=1 // pred_fallthru
      _
    %868 = vsyncpa [#allocation3], 1
    %869 = vsyncpa [#allocation6], 1
    %870 = vsyncpa [#allocation9], 1
    %871 = vsyncpa [#allocation4], 1

</llo_original>
